<compile_context>
chip_gen: v6e
topology: v6e:2x2x1
jax: 0.10.0
libtpu: 0.0.40
codegen_flags: <defaults>
</compile_context>

<pallas_src>
import functools

import jax
import jax.numpy as jnp
from jax.experimental import pallas as pl
from jax.experimental.pallas import tpu as pltpu


def _mp_kernel(x_ref, adj_ref, w1_ref, b1_ref, w2_ref, b2_ref,
               out_ref, agg_ref, xnode_ref, *, neighbor_aggr: str,
               ones_col: int):
    i = pl.program_id(0)            # output row-tile index
    k = pl.program_id(1)            # K chunk of the adjacency contraction
    nk = pl.num_programs(1)

    @pl.when(k == 0)
    def _():
        agg_ref[...] = jnp.zeros_like(agg_ref)

    x_chunk = x_ref[...]                                # (T, d_in_p) f32
    adj_blk = adj_ref[...].astype(jnp.float32)          # (T, T), 0/1 exact

    # K-blocked spmm on the MXU:  agg += adj[i, k] @ x[k]
    # (for 'mean', the row degree rides along for free in the ones column).
    agg_ref[...] += jnp.dot(adj_blk, x_chunk,
                            preferred_element_type=jnp.float32)

    # tile_rows == tile_k, so the k == i chunk of x is exactly this row
    # tile's own features: compute fc1(x) once (no duplicate x DMA stream).
    @pl.when(k == i)
    def _():
        xnode_ref[...] = (jnp.dot(x_chunk, w1_ref[...],
                                  preferred_element_type=jnp.float32)
                          + b1_ref[...])

    # Finalize once per row tile: fc2 on the accumulated aggregate, combine.
    @pl.when(k == nk - 1)
    def _():
        agg = agg_ref[...]
        m = jnp.dot(agg, w2_ref[...],
                    preferred_element_type=jnp.float32) + b2_ref[...]
        if neighbor_aggr == 'sum':
            out = xnode_ref[...] + m
        else:  # 'mean'
            # Degree accumulated by the MXU in the planted ones column.
            deg = agg[:, ones_col:ones_col + 1]
            # Zero-degree guard (reference yields inf/nan there; padded rows
            # also have deg == 0 and are stripped by the wrapper).
            inv = pl.reciprocal(jnp.where(deg > 0.0, deg, 1.0))
            out = xnode_ref[...] + m * inv
        out_ref[...] = out.astype(out_ref.dtype)


def _round_up(v: int, m: int) -> int:
    return ((v + m - 1) // m) * m


def message_passing(x, adj, w1, b1, w2, b2, *, neighbor_aggr: str,
                    tile: int = 512, adj_dtype=jnp.bfloat16):
    """x: (N, D_in), adj: (N, N) dense (0/1), w*: (D_out, D_in) PyTorch layout,
    b*: (D_out,).  adj_dtype=bf16 is lossless for a binary adjacency; pass
    jnp.float32 if adj carries arbitrary edge weights."""
    if neighbor_aggr not in ('sum', 'mean'):
        raise ValueError(f"unknown neighbor_aggr: {neighbor_aggr}")
    mean = neighbor_aggr == 'mean'

    N, d_in = x.shape
    d_out = w1.shape[0]

    # Tile sizing: either one full-extent K chunk (small graphs) or a
    # 128-multiple square tile so the (8,128) block constraint holds.
    if N <= tile:
        T = _round_up(N, 8)
        n_pad = T
    else:
        assert tile % 128 == 0, "tile must be a multiple of 128 when N > tile"
        T = tile
        n_pad = _round_up(N, T)

    # Feature dims padded to lane width; 'mean' reserves one extra input lane
    # for the ones column that carries the degree through the MXU.
    d_eff = d_in + (1 if mean else 0)
    d_in_p = _round_up(d_eff, 128)    # lane-dense MXU contraction width
    d_out_p = _round_up(d_out, 128)   # lane-dense (unmasked) output stores
    ones_col = d_in

    # Zero-pad (glue, not the hot path). Zero rows/cols of adj and zero
    # feature columns do not perturb any sums; padding is stripped at the end.
    x_p = jnp.zeros((n_pad, d_in_p), jnp.float32).at[:N, :d_in].set(
        x.astype(jnp.float32))
    if mean:
        x_p = x_p.at[:N, ones_col].set(1.0)   # degree rider column
    adj_p = jnp.zeros((n_pad, n_pad), adj_dtype).at[:N, :N].set(
        adj.astype(adj_dtype))
    # W rows past d_in (including the ones column) stay zero, so the rider
    # column never leaks into fc1/fc2 outputs.
    w1_p = jnp.zeros((d_in_p, d_out_p), jnp.float32).at[:d_in, :d_out].set(
        w1.T.astype(jnp.float32))
    w2_p = jnp.zeros((d_in_p, d_out_p), jnp.float32).at[:d_in, :d_out].set(
        w2.T.astype(jnp.float32))
    b1_p = jnp.zeros((1, d_out_p), jnp.float32).at[0, :d_out].set(
        b1.astype(jnp.float32))
    b2_p = jnp.zeros((1, d_out_p), jnp.float32).at[0, :d_out].set(
        b2.astype(jnp.float32))

    nt = n_pad // T                   # same extent for row tiles and K chunks

    kernel = functools.partial(_mp_kernel, neighbor_aggr=neighbor_aggr,
                               ones_col=ones_col)

    out_p = pl.pallas_call(
        kernel,
        out_shape=jax.ShapeDtypeStruct((n_pad, d_out_p), jnp.float32),
        grid_spec=pltpu.PrefetchScalarGridSpec(
            num_scalar_prefetch=0,
            grid=(nt, nt),                                        # (rows, K)
            in_specs=[
                pl.BlockSpec((T, d_in_p), lambda i, k: (k, 0)),    # x K-chunk
                pl.BlockSpec((T, T), lambda i, k: (i, k)),         # adj tile
                pl.BlockSpec((d_in_p, d_out_p), lambda i, k: (0, 0)),  # W1^T
                pl.BlockSpec((1, d_out_p), lambda i, k: (0, 0)),       # b1
                pl.BlockSpec((d_in_p, d_out_p), lambda i, k: (0, 0)),  # W2^T
                pl.BlockSpec((1, d_out_p), lambda i, k: (0, 0)),       # b2
            ],
            out_specs=pl.BlockSpec((T, d_out_p), lambda i, k: (i, 0)),
            scratch_shapes=[
                pltpu.VMEM((T, d_in_p), jnp.float32),    # adj@x accumulator
                pltpu.VMEM((T, d_out_p), jnp.float32),   # fc1(x) row tile
            ],
        ),
        compiler_params=pltpu.CompilerParams(
            dimension_semantics=("parallel", "arbitrary")),
    )(x_p, adj_p, w1_p, b1_p, w2_p, b2_p)

    return out_p[:N, :d_out]


def _reference(x, adj, w1, b1, w2, b2, neighbor_aggr):
    with jax.default_matmul_precision('highest'):
        x_node = x @ w1.T + b1
        m = adj @ x
        m = m @ w2.T + b2
        if neighbor_aggr == 'sum':
            return x_node + m
        deg = adj @ jnp.ones((x.shape[0], 1), x.dtype)
        return x_node + m / deg


def _make_inputs(key, N, input_dim, output_dim):
    k_x, k_a, k_w1, k_b1, k_w2, k_b2 = jax.random.split(key, 6)
    x = jax.random.normal(k_x, (N, input_dim), dtype=jnp.float32)
    # Random sparse-ish binary adjacency + self-loops (nonzero degrees).
    adj = (jax.random.uniform(k_a, (N, N)) < 0.3).astype(jnp.float32)
    adj = jnp.minimum(adj + jnp.eye(N, dtype=jnp.float32), 1.0)
    w1 = jax.random.normal(k_w1, (output_dim, input_dim), jnp.float32) * 0.1
    b1 = jax.random.normal(k_b1, (output_dim,), jnp.float32) * 0.1
    w2 = jax.random.normal(k_w2, (output_dim, input_dim), jnp.float32) * 0.1
    b2 = jax.random.normal(k_b2, (output_dim,), jnp.float32) * 0.1
    return x, adj, w1, b1, w2, b2


if __name__ == "__main__":
    key = jax.random.PRNGKey(0)
    key_small, key_big = jax.random.split(key)

    ok = True

    # Small shapes matching the module (N=16 nodes, 8 -> 32 features):
    # single grid step, full-extent K chunk.
    inputs_small = _make_inputs(key_small, N=16, input_dim=8, output_dim=32)
    for aggr in ("sum", "mean"):
        out = message_passing(*inputs_small, neighbor_aggr=aggr)
        out = jax.block_until_ready(out)
        ref = _reference(*inputs_small, aggr)
        if not bool(jnp.allclose(out, ref, atol=1e-4, rtol=1e-4)):
            print(f"MISMATCH small/{aggr}: max_abs_err="
                  f"{float(jnp.max(jnp.abs(out - ref))):.3e}")
            ok = False

    # Larger graph with tile=128 to exercise the multi-tile, K-blocked
    # accumulation path (incl. row/col padding and the degree rider column).
    inputs_big = _make_inputs(key_big, N=200, input_dim=8, output_dim=32)
    for aggr in ("sum", "mean"):
        out = message_passing(*inputs_big, neighbor_aggr=aggr, tile=128)
        out = jax.block_until_ready(out)
        ref = _reference(*inputs_big, aggr)
        if not bool(jnp.allclose(out, ref, atol=1e-4, rtol=1e-4)):
            print(f"MISMATCH big/{aggr}: max_abs_err="
                  f"{float(jnp.max(jnp.abs(out - ref))):.3e}")
            ok = False

    if ok:
        print("KERNEL_OK")
</pallas_src>

<mosaic_0001>
module attributes {stable_mosaic.version = 11 : i64} {
  func.func @_mp_kernel(%arg0: i32, %arg1: i32, %arg2: memref<16x128xf32, #tpu.memory_space<vmem>>, %arg3: memref<16x16xbf16, #tpu.memory_space<vmem>>, %arg4: memref<128x128xf32, #tpu.memory_space<vmem>>, %arg5: memref<1x128xf32, #tpu.memory_space<vmem>>, %arg6: memref<128x128xf32, #tpu.memory_space<vmem>>, %arg7: memref<1x128xf32, #tpu.memory_space<vmem>>, %arg8: memref<16x128xf32, #tpu.memory_space<vmem>>, %arg9: memref<16x128xf32, #tpu.memory_space<vmem>>, %arg10: memref<16x128xf32, #tpu.memory_space<vmem>>) attributes {dimension_semantics = [#tpu.dimension_semantics<parallel>, #tpu.dimension_semantics<arbitrary>], iteration_bounds = array<i64: 1, 1>, scalar_prefetch = 0 : i64, scratch_operands = 2 : i64, tpu.core_type = #tpu.core_type<tc>, window_params = [{transform_indices = @transform_0, window_bounds = array<i64: 16, 128>}, {transform_indices = @transform_1, window_bounds = array<i64: 16, 16>}, {pipeline_mode = #tpu.pipeline_mode<synchronous>, transform_indices = @transform_2, window_bounds = array<i64: 128, 128>}, {pipeline_mode = #tpu.pipeline_mode<synchronous>, transform_indices = @transform_3, window_bounds = array<i64: 1, 128>}, {pipeline_mode = #tpu.pipeline_mode<synchronous>, transform_indices = @transform_4, window_bounds = array<i64: 128, 128>}, {pipeline_mode = #tpu.pipeline_mode<synchronous>, transform_indices = @transform_5, window_bounds = array<i64: 1, 128>}, {transform_indices = @transform_6, window_bounds = array<i64: 16, 128>}]} {
    %c0_i32 = arith.constant 0 : i32
    %0 = arith.cmpi eq, %arg1, %c0_i32 : i32
    %1 = arith.extui %0 : i1 to i32
    %c0_i32_0 = arith.constant 0 : i32
    %2 = arith.cmpi ne, %1, %c0_i32_0 : i32
    scf.if %2 {
      %cst_11 = arith.constant 0.000000e+00 : f32
      %16 = vector.broadcast %cst_11 : f32 to vector<16x128xf32>
      %c0_12 = arith.constant 0 : index
      %c0_13 = arith.constant 0 : index
      %17 = vector.load %arg9[%c0_12, %c0_13] : memref<16x128xf32, #tpu.memory_space<vmem>>, vector<16x128xf32>
      tpu.vector_store %arg9[%c0_12, %c0_13], %16 {strides = array<i32>} : memref<16x128xf32, #tpu.memory_space<vmem>>, vector<16x128xf32>,
    } else {
    }
    %c0 = arith.constant 0 : index
    %c0_1 = arith.constant 0 : index
    %3 = vector.load %arg2[%c0, %c0_1] : memref<16x128xf32, #tpu.memory_space<vmem>>, vector<16x128xf32>
    %c0_2 = arith.constant 0 : index
    %c0_3 = arith.constant 0 : index
    %4 = vector.load %arg3[%c0_2, %c0_3] : memref<16x16xbf16, #tpu.memory_space<vmem>>, vector<16x16xbf16>
    %5 = arith.extf %4 : vector<16x16xbf16> to vector<16x16xf32>
    %c0_4 = arith.constant 0 : index
    %c0_5 = arith.constant 0 : index
    %6 = vector.load %arg9[%c0_4, %c0_5] : memref<16x128xf32, #tpu.memory_space<vmem>>, vector<16x128xf32>
    %cst = arith.constant dense<0.000000e+00> : vector<16x128xf32>
    %7 = tpu.matmul %5, %3, %cst {dimension_numbers = #tpu.dot_dimension_numbers<[1], [0], [0], [1], [0, 0, 1, 1], [], []>} : vector<16x16xf32>, vector<16x128xf32>, vector<16x128xf32> -> vector<16x128xf32>
    %8 = arith.addf %6, %7 : vector<16x128xf32>
    %c0_6 = arith.constant 0 : index
    %c0_7 = arith.constant 0 : index
    %9 = vector.load %arg9[%c0_6, %c0_7] : memref<16x128xf32, #tpu.memory_space<vmem>>, vector<16x128xf32>
    tpu.vector_store %arg9[%c0_6, %c0_7], %8 {strides = array<i32>} : memref<16x128xf32, #tpu.memory_space<vmem>>, vector<16x128xf32>,
    %10 = arith.cmpi eq, %arg1, %arg0 : i32
    %11 = arith.extui %10 : i1 to i32
    %c0_i32_8 = arith.constant 0 : i32
    %12 = arith.cmpi ne, %11, %c0_i32_8 : i32
    scf.if %12 {
      %c0_11 = arith.constant 0 : index
      %c0_12 = arith.constant 0 : index
      %16 = vector.load %arg4[%c0_11, %c0_12] : memref<128x128xf32, #tpu.memory_space<vmem>>, vector<128x128xf32>
      %cst_13 = arith.constant dense<0.000000e+00> : vector<16x128xf32>
      %17 = tpu.matmul %3, %16, %cst_13 {dimension_numbers = #tpu.dot_dimension_numbers<[1], [0], [0], [1], [0, 0, 1, 1], [], []>} : vector<16x128xf32>, vector<128x128xf32>, vector<16x128xf32> -> vector<16x128xf32>
      %c0_14 = arith.constant 0 : index
      %c0_15 = arith.constant 0 : index
      %18 = vector.load %arg5[%c0_14, %c0_15] : memref<1x128xf32, #tpu.memory_space<vmem>>, vector<1x128xf32>
      %19 = vector.broadcast %18 : vector<1x128xf32> to vector<16x128xf32>
      %20 = arith.addf %17, %19 : vector<16x128xf32>
      %c0_16 = arith.constant 0 : index
      %c0_17 = arith.constant 0 : index
      %21 = vector.load %arg10[%c0_16, %c0_17] : memref<16x128xf32, #tpu.memory_space<vmem>>, vector<16x128xf32>
      tpu.vector_store %arg10[%c0_16, %c0_17], %20 {strides = array<i32>} : memref<16x128xf32, #tpu.memory_space<vmem>>, vector<16x128xf32>,
    } else {
    }
    %c0_i32_9 = arith.constant 0 : i32
    %13 = arith.cmpi eq, %arg1, %c0_i32_9 : i32
    %14 = arith.extui %13 : i1 to i32
    %c0_i32_10 = arith.constant 0 : i32
    %15 = arith.cmpi ne, %14, %c0_i32_10 : i32
    scf.if %15 {
      %c0_11 = arith.constant 0 : index
      %c0_12 = arith.constant 0 : index
      %16 = vector.load %arg9[%c0_11, %c0_12] : memref<16x128xf32, #tpu.memory_space<vmem>>, vector<16x128xf32>
      %c0_13 = arith.constant 0 : index
      %c0_14 = arith.constant 0 : index
      %17 = vector.load %arg6[%c0_13, %c0_14] : memref<128x128xf32, #tpu.memory_space<vmem>>, vector<128x128xf32>
      %cst_15 = arith.constant dense<0.000000e+00> : vector<16x128xf32>
      %18 = tpu.matmul %16, %17, %cst_15 {dimension_numbers = #tpu.dot_dimension_numbers<[1], [0], [0], [1], [0, 0, 1, 1], [], []>} : vector<16x128xf32>, vector<128x128xf32>, vector<16x128xf32> -> vector<16x128xf32>
      %c0_16 = arith.constant 0 : index
      %c0_17 = arith.constant 0 : index
      %19 = vector.load %arg7[%c0_16, %c0_17] : memref<1x128xf32, #tpu.memory_space<vmem>>, vector<1x128xf32>
      %20 = vector.broadcast %19 : vector<1x128xf32> to vector<16x128xf32>
      %21 = arith.addf %18, %20 : vector<16x128xf32>
      %c0_18 = arith.constant 0 : index
      %c0_19 = arith.constant 0 : index
      %22 = vector.load %arg10[%c0_18, %c0_19] : memref<16x128xf32, #tpu.memory_space<vmem>>, vector<16x128xf32>
      %23 = arith.addf %22, %21 : vector<16x128xf32>
      %c0_20 = arith.constant 0 : index
      %c0_21 = arith.constant 0 : index
      %24 = vector.load %arg8[%c0_20, %c0_21] : memref<16x128xf32, #tpu.memory_space<vmem>>, vector<16x128xf32>
      tpu.vector_store %arg8[%c0_20, %c0_21], %23 {strides = array<i32>} : memref<16x128xf32, #tpu.memory_space<vmem>>, vector<16x128xf32>,
    } else {
    }
    return
  }
  func.func @transform_0(%arg0: i32, %arg1: i32) -> (i32, i32) {
    %c0_i32 = arith.constant 0 : i32
    %c0_i32_0 = arith.constant 0 : i32
    return %arg1, %c0_i32 : i32, i32
  }
  func.func @transform_1(%arg0: i32, %arg1: i32) -> (i32, i32) {
    %c0_i32 = arith.constant 0 : i32
    return %arg0, %arg1 : i32, i32
  }
  func.func @transform_2(%arg0: i32, %arg1: i32) -> (i32, i32) {
    %c0_i32 = arith.constant 0 : i32
    %c0_i32_0 = arith.constant 0 : i32
    %c0_i32_1 = arith.constant 0 : i32
    return %c0_i32, %c0_i32_0 : i32, i32
  }
  func.func @transform_3(%arg0: i32, %arg1: i32) -> (i32, i32) {
    %c0_i32 = arith.constant 0 : i32
    %c0_i32_0 = arith.constant 0 : i32
    %c0_i32_1 = arith.constant 0 : i32
    return %c0_i32, %c0_i32_0 : i32, i32
  }
  func.func @transform_4(%arg0: i32, %arg1: i32) -> (i32, i32) {
    %c0_i32 = arith.constant 0 : i32
    %c0_i32_0 = arith.constant 0 : i32
    %c0_i32_1 = arith.constant 0 : i32
    return %c0_i32, %c0_i32_0 : i32, i32
  }
  func.func @transform_5(%arg0: i32, %arg1: i32) -> (i32, i32) {
    %c0_i32 = arith.constant 0 : i32
    %c0_i32_0 = arith.constant 0 : i32
    %c0_i32_1 = arith.constant 0 : i32
    return %c0_i32, %c0_i32_0 : i32, i32
  }
  func.func @transform_6(%arg0: i32, %arg1: i32) -> (i32, i32) {
    %c0_i32 = arith.constant 0 : i32
    %c0_i32_0 = arith.constant 0 : i32
    return %arg0, %c0_i32 : i32, i32
  }
}

</mosaic_0001>

<llo_original>
// kernel: tpu_custom_call.1
$region0: #{tpu_custom_call.1}
  #allocation0 [shape = 'u32[]', space=smem, size = 0x4, offset = 0x4, fixed_abs, tag = 'smem constant byte address 0x4 - core index']
  #allocation1 [shape = 'u32[144,128]{1,0:T(1,128)}', space=vmem, size = 0x12000, scoped, tag = 'internal scratch']
  #allocation2 [shape = 'f32[16,128]{1,0:T(8,128)}', space=vmem, size = 0x2000, scoped, tag = 'scratch operand']
  #allocation3 [shape = 'f32[16,128]{1,0:T(8,128)}', space=vmem, size = 0x2000, scoped, tag = 'scratch operand']
  %s0 = inlined_call_operand.hbm [shape: f32[16,128], index: 0, kind: input, shape index: {}]
  %s1 = inlined_call_operand.hbm [shape: bf16[16,16], index: 1, kind: input, shape index: {}]
  %s2 = inlined_call_operand.hbm [shape: f32[128,128], index: 2, kind: input, shape index: {}]
  %s3 = inlined_call_operand.vmem [shape: f32[1,128], index: 3, kind: input, shape index: {}]
  %s4 = inlined_call_operand.hbm [shape: f32[128,128], index: 4, kind: input, shape index: {}]
  %s5 = inlined_call_operand.vmem [shape: f32[1,128], index: 5, kind: input, shape index: {}]
  %s6 = inlined_call_operand.hbm [shape: f32[16,128], index: 6, kind: output, shape index: {}]
  %s7 = sld [smem:[#allocation0]]
  $region62: #{tpu_custom_call.1} parent=0
    _
  %s9 = ssub.s32 1, %s7
  %s10 = scalar_select 0, %s9, %s7
  $region1: #{tpu_custom_call.1} parent=0
    #allocation4 [shape = 'u8[8192]{0}', space=vmem, size = 0x2000, scoped, tag = 'input window, operand 0, single buffered']
    #allocation5 [shape = 's32[1]{0}', space=sflag, size = 0x4, scoped, tag = 'scoped memory for tpu_custom_call.1']
    #allocation6 [shape = 's32[1]{0}', space=sflag, size = 0x4, scoped, tag = 'scoped memory for tpu_custom_call.1']
    #allocation7 [shape = 'u8[4096]{0}', space=vmem, size = 0x1000, scoped, tag = 'input window, operand 1, single buffered']
    #allocation8 [shape = 's32[1]{0}', space=sflag, size = 0x4, scoped, tag = 'scoped memory for tpu_custom_call.1']
    #allocation9 [shape = 'u8[65536]{0}', space=vmem, size = 0x10000, scoped, tag = 'input window, operand 2, single buffered']
    #allocation10 [shape = 'u8[65536]{0}', space=vmem, size = 0x10000, scoped, tag = 'input window, operand 4, single buffered']
    #allocation11 [shape = 's32[1]{0}', space=sflag, size = 0x4, scoped, tag = 'scoped memory for tpu_custom_call.1']
    #allocation12 [shape = 'u8[8192]{0}', space=vmem, size = 0x2000, scoped, tag = 'output window, operand 0, single buffered']
    %11 = vsyncpa [#allocation5], 0
    %12 = vsyncpa [#allocation8], 0
    %13 = vsyncpa [#allocation11], 0
    %14 = vsyncpa [#allocation6], 0
    // Predicated region
    $region2: #{tpu_custom_call.1} parent=1 // pred_check
      _
    $region3: #{tpu_custom_call.1} parent=1 // pred_check_branch
      %16 = sbr.rel (0) target = $region5
    $region4: #{tpu_custom_call.1} parent=1 // pred_region
      %s18 = ssub.s32 256, 256
      %19 = vsyncadd [#allocation5], %s18
      %s20 = sshll.u32 [#allocation4], 4
      %s21 = int_to_ptr.vmem [resolvable:$true] %s20
      %26 = dma.hbm_to_vmem [thread:$0]  %s0, 256, %s21, [#allocation5], 128, 128, 8
    $region5: #{tpu_custom_call.1} parent=1 // pred_fallthru
      _
    // Predicated region
    $region6: #{tpu_custom_call.1} parent=1 // pred_check
      _
    $region7: #{tpu_custom_call.1} parent=1 // pred_check_branch
      %28 = sbr.rel (0) target = $region9
    $region8: #{tpu_custom_call.1} parent=1 // pred_region
      %s30 = ssub.s32 128, 128
      %31 = vsyncadd [#allocation8], %s30
      %s32 = sshll.u32 [#allocation7], 4
      %s33 = int_to_ptr.vmem [resolvable:$true] %s32
      %38 = dma.hbm_to_vmem [thread:$0]  %s1, 128, %s33, [#allocation8], 64, 64, 4
    $region9: #{tpu_custom_call.1} parent=1 // pred_fallthru
      _
    // Predicated region
    $region10: #{tpu_custom_call.1} parent=1 // pred_check
      _
    $region11: #{tpu_custom_call.1} parent=1 // pred_check_branch
      %40 = sbr.rel (0) target = $region13
    $region12: #{tpu_custom_call.1} parent=1 // pred_region
      %s42 = ssub.s32 2048, 2048
      %43 = vsyncadd [#allocation8], %s42
      %s44 = sshll.u32 [#allocation9], 4
      %s45 = int_to_ptr.vmem [resolvable:$true] %s44
      %50 = dma.hbm_to_vmem [thread:$0]  %s2, 2048, %s45, [#allocation8], 128, 128, 8
    $region13: #{tpu_custom_call.1} parent=1 // pred_fallthru
      _
    // Predicated region
    $region14: #{tpu_custom_call.1} parent=1 // pred_check
      _
    $region15: #{tpu_custom_call.1} parent=1 // pred_check_branch
      %52 = sbr.rel (0) target = $region17
    $region16: #{tpu_custom_call.1} parent=1 // pred_region
      _
    $region17: #{tpu_custom_call.1} parent=1 // pred_fallthru
      _
    // Predicated region
    $region18: #{tpu_custom_call.1} parent=1 // pred_check
      _
    $region19: #{tpu_custom_call.1} parent=1 // pred_check_branch
      %54 = sbr.rel (0) target = $region21
    $region20: #{tpu_custom_call.1} parent=1 // pred_region
      %s56 = ssub.s32 2048, 2048
      %57 = vsyncadd [#allocation11], %s56
      %s58 = sshll.u32 [#allocation10], 4
      %s59 = int_to_ptr.vmem [resolvable:$true] %s58
      %64 = dma.hbm_to_vmem [thread:$0]  %s4, 2048, %s59, [#allocation11], 128, 128, 8
    $region21: #{tpu_custom_call.1} parent=1 // pred_fallthru
      _
    // Predicated region
    $region22: #{tpu_custom_call.1} parent=1 // pred_check
      _
    $region23: #{tpu_custom_call.1} parent=1 // pred_check_branch
      %66 = sbr.rel (0) target = $region25
    $region24: #{tpu_custom_call.1} parent=1 // pred_region
      _
    $region25: #{tpu_custom_call.1} parent=1 // pred_fallthru
      _
    // Predicated region
    $region26: #{tpu_custom_call.1} parent=1 // pred_check
      _
    $region27: #{tpu_custom_call.1} parent=1 // pred_check_branch
      %68 = sbr.rel (0) target = $region29
    $region28: #{tpu_custom_call.1} parent=1 // pred_region
      %69 = dma.done [#allocation5], 256
    $region29: #{tpu_custom_call.1} parent=1 // pred_fallthru
      _
    // Predicated region
    $region30: #{tpu_custom_call.1} parent=1 // pred_check
      _
    $region31: #{tpu_custom_call.1} parent=1 // pred_check_branch
      %71 = sbr.rel (0) target = $region33
    $region32: #{tpu_custom_call.1} parent=1 // pred_region
      %72 = dma.done [#allocation8], 128
    $region33: #{tpu_custom_call.1} parent=1 // pred_fallthru
      _
    // Predicated region
    $region34: #{tpu_custom_call.1} parent=1 // pred_check
      _
    $region35: #{tpu_custom_call.1} parent=1 // pred_check_branch
      %74 = sbr.rel (0) target = $region37
    $region36: #{tpu_custom_call.1} parent=1 // pred_region
      %75 = dma.done [#allocation8], 2048
    $region37: #{tpu_custom_call.1} parent=1 // pred_fallthru
      _
    // Predicated region
    $region38: #{tpu_custom_call.1} parent=1 // pred_check
      _
    $region39: #{tpu_custom_call.1} parent=1 // pred_check_branch
      %77 = sbr.rel (0) target = $region41
    $region40: #{tpu_custom_call.1} parent=1 // pred_region
      %78 = dma.done [#allocation11], 2048
    $region41: #{tpu_custom_call.1} parent=1 // pred_fallthru
      _
    %p79 = scmp.eq.s32.totalorder 0, 0
    // Predicated region
    $region42: #{tpu_custom_call.1} parent=1 // pred_check
      %p80 = pneg %p79
    $region43: #{tpu_custom_call.1} parent=1 // pred_check_branch
      %82 = sbr.rel (%p80) target = $region45
    $region44: #{tpu_custom_call.1} parent=1 // pred_region
      %83 = vst [vmem:[#allocation2] sm:$0xff] 0.0
      %84 = vst [vmem:[#allocation2 + $0x8] sm:$0xff] 0.0
    $region45: #{tpu_custom_call.1} parent=1 // pred_fallthru
      _
    %v85 = vld [vmem:[#allocation4] sm:$0xff]
    %v86 = vld [vmem:[#allocation4 + $0x8] sm:$0xff]
    %v87 = vld [vmem:[#allocation7] sm:$0xf]
    %v88 = vld [vmem:[#allocation7 + $0x4] sm:$0xf]
    %v89 = vunpack.c.l.bf16 %v87
    %v90 = vunpack.c.l.bf16 %v88
    %v91 = vld [vmem:[#allocation2] sm:$0xff]
    %v92 = vld [vmem:[#allocation2 + $0x8] sm:$0xff]
    %vm93 = vcmask 130048
    %v95 = vsel %vm93, %v89, 0
    %v98 = vsel %vm93, %v90, 0
    %100 = vmatprep.subr.mxu0 0.0
    %101 = vmatpush1.msra.mxu0 0.0
    %102 = vmatprep.subr.mxu0 0.0
    %103 = vmatpush1.msra.mxu0 0.0
    %104 = vmatprep.subr.mxu0 0.0
    %105 = vmatpush1.msra.mxu0 0.0
    %106 = vmatprep.subr.mxu0 0.0
    %107 = vmatpush1.msra.mxu0 0.0
    %108 = vmatprep.subr.mxu0 0.0
    %109 = vmatpush1.msra.mxu0 0.0
    %110 = vmatprep.subr.mxu0 0.0
    %111 = vmatpush1.msra.mxu0 0.0
    %112 = vmatprep.subr.mxu0 0.0
    %113 = vmatpush1.msra.mxu0 0.0
    %114 = vmatprep.subr.mxu0 0.0
    %115 = vmatpush1.msra.mxu0 0.0
    %116 = vmatprep.subr.mxu0 0.0
    %117 = vmatpush1.msra.mxu0 0.0
    %118 = vmatprep.subr.mxu0 0.0
    %119 = vmatpush1.msra.mxu0 0.0
    %120 = vmatprep.subr.mxu0 0.0
    %121 = vmatpush1.msra.mxu0 0.0
    %122 = vmatprep.subr.mxu0 0.0
    %123 = vmatpush1.msra.mxu0 0.0
    %124 = vmatprep.subr.mxu0 0.0
    %125 = vmatpush1.msra.mxu0 0.0
    %126 = vmatprep.subr.mxu0 0.0
    %127 = vmatpush1.msra.mxu0 0.0
    %128 = vmatprep.subr.mxu0 0.0
    %129 = vmatpush1.msra.mxu0 %v86
    %130 = vmatprep.subr.mxu0 0.0
    %131 = vmatpush1.msra.mxu0 %v85
    %132 = vmatprep.subr.mxu0 0.0
    %133 = vmatpush2.msra.mxu0 0.0
    %134 = vmatprep.subr.mxu0 0.0
    %135 = vmatpush2.msra.mxu0 0.0
    %136 = vmatprep.subr.mxu0 0.0
    %137 = vmatpush2.msra.mxu0 0.0
    %138 = vmatprep.subr.mxu0 0.0
    %139 = vmatpush2.msra.mxu0 0.0
    %140 = vmatprep.subr.mxu0 0.0
    %141 = vmatpush2.msra.mxu0 0.0
    %142 = vmatprep.subr.mxu0 0.0
    %143 = vmatpush2.msra.mxu0 0.0
    %144 = vmatprep.subr.mxu0 0.0
    %145 = vmatpush2.msra.mxu0 0.0
    %146 = vmatprep.subr.mxu0 0.0
    %147 = vmatpush2.msra.mxu0 0.0
    %148 = vmatprep.subr.mxu0 0.0
    %149 = vmatpush2.msra.mxu0 0.0
    %150 = vmatprep.subr.mxu0 0.0
    %151 = vmatpush2.msra.mxu0 0.0
    %152 = vmatprep.subr.mxu0 0.0
    %153 = vmatpush2.msra.mxu0 0.0
    %154 = vmatprep.subr.mxu0 0.0
    %155 = vmatpush2.msra.mxu0 0.0
    %156 = vmatprep.subr.mxu0 0.0
    %157 = vmatpush2.msra.mxu0 0.0
    %158 = vmatprep.subr.mxu0 0.0
    %159 = vmatpush2.msra.mxu0 0.0
    %160 = vmatprep.subr.mxu0 0.0
    %161 = vmatpush2.msra.mxu0 0.0
    %162 = vmatprep.subr.mxu0 0.0
    %163 = vmatpush2.msra.mxu0 0.0
    %164 = vmatprep.mubr.f32.mxu0 0.0
    %165 = vmatmul.mubr.f32.gmra.mxu0 %v95
    %v166 = vpop.f32.mrf.mxu0
    %v167 = vadd.f32 0.0, %v166
    %v168 = vpop.f32.mrf.mxu0
    %169 = vmatprep.mubr.f32.mxu0 0.0
    %170 = vmatmul.mubr.f32.gmra.mxu0 %v98
    %v171 = vpop.f32.mrf.mxu0
    %v172 = vadd.f32 0.0, %v171
    %v173 = vpop.f32.mrf.mxu0
    %174 = vdwg.mxu0
    %v175 = vadd.f32 %v91, %v167
    %v176 = vadd.f32 %v92, %v172
    %177 = vst [vmem:[#allocation2] sm:$0xff] %v175
    %178 = vst [vmem:[#allocation2 + $0x8] sm:$0xff] %v176
    %p179 = scmp.eq.s32.totalorder 0, 0
    // Predicated region
    $region46: #{tpu_custom_call.1} parent=1 // pred_check
      %p180 = pneg %p179
    $region47: #{tpu_custom_call.1} parent=1 // pred_check_branch
      %182 = sbr.rel (%p180) target = $region49
    $region48: #{tpu_custom_call.1} parent=1 // pred_region
      %v183 = vld [vmem:[#allocation9] sm:$0xff]
      %v184 = vld [vmem:[#allocation9 + $0x8] sm:$0xff]
      %v185 = vld [vmem:[#allocation9 + $0x10] sm:$0xff]
      %v186 = vld [vmem:[#allocation9 + $0x18] sm:$0xff]
      %v187 = vld [vmem:[#allocation9 + $0x20] sm:$0xff]
      %v188 = vld [vmem:[#allocation9 + $0x28] sm:$0xff]
      %v189 = vld [vmem:[#allocation9 + $0x30] sm:$0xff]
      %v190 = vld [vmem:[#allocation9 + $0x38] sm:$0xff]
      %v191 = vld [vmem:[#allocation9 + $0x40] sm:$0xff]
      %v192 = vld [vmem:[#allocation9 + $0x48] sm:$0xff]
      %v193 = vld [vmem:[#allocation9 + $0x50] sm:$0xff]
      %v194 = vld [vmem:[#allocation9 + $0x58] sm:$0xff]
      %v195 = vld [vmem:[#allocation9 + $0x60] sm:$0xff]
      %v196 = vld [vmem:[#allocation9 + $0x68] sm:$0xff]
      %v197 = vld [vmem:[#allocation9 + $0x70] sm:$0xff]
      %v198 = vld [vmem:[#allocation9 + $0x78] sm:$0xff]
      %v199 = vld [vmem:[%s3] sm:$0x1]
      %v201 = vlaneseq
      %v202 = vshrl.u32 %v201, 7
      %v203 = vsub.s32 0, %v202
      %v204 = vrot.slane %v199, %v203
      %206 = vmatprep.subr.mxu0 0.0
      %207 = vmatpush1.msra.mxu0 %v198
      %208 = vmatprep.subr.mxu0 0.0
      %209 = vmatpush1.msra.mxu0 %v197
      %210 = vmatprep.subr.mxu0 0.0
      %211 = vmatpush1.msra.mxu0 %v196
      %212 = vmatprep.subr.mxu0 0.0
      %213 = vmatpush1.msra.mxu0 %v195
      %214 = vmatprep.subr.mxu0 0.0
      %215 = vmatpush1.msra.mxu0 %v194
      %216 = vmatprep.subr.mxu0 0.0
      %217 = vmatpush1.msra.mxu0 %v193
      %218 = vmatprep.subr.mxu0 0.0
      %219 = vmatpush1.msra.mxu0 %v192
      %220 = vmatprep.subr.mxu0 0.0
      %221 = vmatpush1.msra.mxu0 %v191
      %222 = vmatprep.subr.mxu0 0.0
      %223 = vmatpush1.msra.mxu0 %v190
      %224 = vmatprep.subr.mxu0 0.0
      %225 = vmatpush1.msra.mxu0 %v189
      %226 = vmatprep.subr.mxu0 0.0
      %227 = vmatpush1.msra.mxu0 %v188
      %228 = vmatprep.subr.mxu0 0.0
      %229 = vmatpush1.msra.mxu0 %v187
      %230 = vmatprep.subr.mxu0 0.0
      %231 = vmatpush1.msra.mxu0 %v186
      %232 = vmatprep.subr.mxu0 0.0
      %233 = vmatpush1.msra.mxu0 %v185
      %234 = vmatprep.subr.mxu0 0.0
      %235 = vmatpush1.msra.mxu0 %v184
      %236 = vmatprep.subr.mxu0 0.0
      %237 = vmatpush1.msra.mxu0 %v183
      %238 = vmatprep.subr.mxu0 0.0
      %239 = vmatpush2.msra.mxu0 0.0
      %240 = vmatprep.subr.mxu0 0.0
      %241 = vmatpush2.msra.mxu0 0.0
      %242 = vmatprep.subr.mxu0 0.0
      %243 = vmatpush2.msra.mxu0 0.0
      %244 = vmatprep.subr.mxu0 0.0
      %245 = vmatpush2.msra.mxu0 0.0
      %246 = vmatprep.subr.mxu0 0.0
      %247 = vmatpush2.msra.mxu0 0.0
      %248 = vmatprep.subr.mxu0 0.0
      %249 = vmatpush2.msra.mxu0 0.0
      %250 = vmatprep.subr.mxu0 0.0
      %251 = vmatpush2.msra.mxu0 0.0
      %252 = vmatprep.subr.mxu0 0.0
      %253 = vmatpush2.msra.mxu0 0.0
      %254 = vmatprep.subr.mxu0 0.0
      %255 = vmatpush2.msra.mxu0 0.0
      %256 = vmatprep.subr.mxu0 0.0
      %257 = vmatpush2.msra.mxu0 0.0
      %258 = vmatprep.subr.mxu0 0.0
      %259 = vmatpush2.msra.mxu0 0.0
      %260 = vmatprep.subr.mxu0 0.0
      %261 = vmatpush2.msra.mxu0 0.0
      %262 = vmatprep.subr.mxu0 0.0
      %263 = vmatpush2.msra.mxu0 0.0
      %264 = vmatprep.subr.mxu0 0.0
      %265 = vmatpush2.msra.mxu0 0.0
      %266 = vmatprep.subr.mxu0 0.0
      %267 = vmatpush2.msra.mxu0 0.0
      %268 = vmatprep.subr.mxu0 0.0
      %269 = vmatpush2.msra.mxu0 0.0
      %270 = vmatprep.mubr.f32.mxu0 0.0
      %271 = vmatmul.mubr.f32.gmra.mxu0 %v85
      %v272 = vpop.f32.mrf.mxu0
      %v273 = vadd.f32 %v204, %v272
      %v274 = vpop.f32.mrf.mxu0
      %275 = vmatprep.mubr.f32.mxu0 0.0
      %276 = vmatmul.mubr.f32.gmra.mxu0 %v86
      %v277 = vpop.f32.mrf.mxu0
      %v278 = vadd.f32 %v204, %v277
      %v279 = vpop.f32.mrf.mxu0
      %280 = vdwg.mxu0
      %281 = vst [vmem:[#allocation3] sm:$0xff] %v273
      %282 = vst [vmem:[#allocation3 + $0x8] sm:$0xff] %v278
    $region49: #{tpu_custom_call.1} parent=1 // pred_fallthru
      _
    // Predicated region
    $region50: #{tpu_custom_call.1} parent=1 // pred_check
      %p283 = pneg %p79
    $region51: #{tpu_custom_call.1} parent=1 // pred_check_branch
      %285 = sbr.rel (%p283) target = $region53
    $region52: #{tpu_custom_call.1} parent=1 // pred_region
      %v286 = vld [vmem:[#allocation2] sm:$0xff]
      %v287 = vld [vmem:[#allocation2 + $0x8] sm:$0xff]
      %v288 = vld [vmem:[#allocation10] sm:$0xff]
      %v289 = vld [vmem:[#allocation10 + $0x8] sm:$0xff]
      %v290 = vld [vmem:[#allocation10 + $0x10] sm:$0xff]
      %v291 = vld [vmem:[#allocation10 + $0x18] sm:$0xff]
      %v292 = vld [vmem:[#allocation10 + $0x20] sm:$0xff]
      %v293 = vld [vmem:[#allocation10 + $0x28] sm:$0xff]
      %v294 = vld [vmem:[#allocation10 + $0x30] sm:$0xff]
      %v295 = vld [vmem:[#allocation10 + $0x38] sm:$0xff]
      %v296 = vld [vmem:[#allocation10 + $0x40] sm:$0xff]
      %v297 = vld [vmem:[#allocation10 + $0x48] sm:$0xff]
      %v298 = vld [vmem:[#allocation10 + $0x50] sm:$0xff]
      %v299 = vld [vmem:[#allocation10 + $0x58] sm:$0xff]
      %v300 = vld [vmem:[#allocation10 + $0x60] sm:$0xff]
      %v301 = vld [vmem:[#allocation10 + $0x68] sm:$0xff]
      %v302 = vld [vmem:[#allocation10 + $0x70] sm:$0xff]
      %v303 = vld [vmem:[#allocation10 + $0x78] sm:$0xff]
      %v304 = vld [vmem:[%s5] sm:$0x1]
      %v306 = vlaneseq
      %v307 = vshrl.u32 %v306, 7
      %v308 = vsub.s32 0, %v307
      %v309 = vrot.slane %v304, %v308
      %311 = vmatprep.subr.mxu0 0.0
      %312 = vmatpush1.msra.mxu0 %v303
      %313 = vmatprep.subr.mxu0 0.0
      %314 = vmatpush1.msra.mxu0 %v302
      %315 = vmatprep.subr.mxu0 0.0
      %316 = vmatpush1.msra.mxu0 %v301
      %317 = vmatprep.subr.mxu0 0.0
      %318 = vmatpush1.msra.mxu0 %v300
      %319 = vmatprep.subr.mxu0 0.0
      %320 = vmatpush1.msra.mxu0 %v299
      %321 = vmatprep.subr.mxu0 0.0
      %322 = vmatpush1.msra.mxu0 %v298
      %323 = vmatprep.subr.mxu0 0.0
      %324 = vmatpush1.msra.mxu0 %v297
      %325 = vmatprep.subr.mxu0 0.0
      %326 = vmatpush1.msra.mxu0 %v296
      %327 = vmatprep.subr.mxu0 0.0
      %328 = vmatpush1.msra.mxu0 %v295
      %329 = vmatprep.subr.mxu0 0.0
      %330 = vmatpush1.msra.mxu0 %v294
      %331 = vmatprep.subr.mxu0 0.0
      %332 = vmatpush1.msra.mxu0 %v293
      %333 = vmatprep.subr.mxu0 0.0
      %334 = vmatpush1.msra.mxu0 %v292
      %335 = vmatprep.subr.mxu0 0.0
      %336 = vmatpush1.msra.mxu0 %v291
      %337 = vmatprep.subr.mxu0 0.0
      %338 = vmatpush1.msra.mxu0 %v290
      %339 = vmatprep.subr.mxu0 0.0
      %340 = vmatpush1.msra.mxu0 %v289
      %341 = vmatprep.subr.mxu0 0.0
      %342 = vmatpush1.msra.mxu0 %v288
      %343 = vmatprep.subr.mxu0 0.0
      %344 = vmatpush2.msra.mxu0 0.0
      %345 = vmatprep.subr.mxu0 0.0
      %346 = vmatpush2.msra.mxu0 0.0
      %347 = vmatprep.subr.mxu0 0.0
      %348 = vmatpush2.msra.mxu0 0.0
      %349 = vmatprep.subr.mxu0 0.0
      %350 = vmatpush2.msra.mxu0 0.0
      %351 = vmatprep.subr.mxu0 0.0
      %352 = vmatpush2.msra.mxu0 0.0
      %353 = vmatprep.subr.mxu0 0.0
      %354 = vmatpush2.msra.mxu0 0.0
      %355 = vmatprep.subr.mxu0 0.0
      %356 = vmatpush2.msra.mxu0 0.0
      %357 = vmatprep.subr.mxu0 0.0
      %358 = vmatpush2.msra.mxu0 0.0
      %359 = vmatprep.subr.mxu0 0.0
      %360 = vmatpush2.msra.mxu0 0.0
      %361 = vmatprep.subr.mxu0 0.0
      %362 = vmatpush2.msra.mxu0 0.0
      %363 = vmatprep.subr.mxu0 0.0
      %364 = vmatpush2.msra.mxu0 0.0
      %365 = vmatprep.subr.mxu0 0.0
      %366 = vmatpush2.msra.mxu0 0.0
      %367 = vmatprep.subr.mxu0 0.0
      %368 = vmatpush2.msra.mxu0 0.0
      %369 = vmatprep.subr.mxu0 0.0
      %370 = vmatpush2.msra.mxu0 0.0
      %371 = vmatprep.subr.mxu0 0.0
      %372 = vmatpush2.msra.mxu0 0.0
      %373 = vmatprep.subr.mxu0 0.0
      %374 = vmatpush2.msra.mxu0 0.0
      %375 = vmatprep.mubr.f32.mxu0 0.0
      %376 = vmatmul.mubr.f32.gmra.mxu0 %v286
      %v377 = vpop.f32.mrf.mxu0
      %v378 = vadd.f32 %v309, %v377
      %v379 = vpop.f32.mrf.mxu0
      %380 = vmatprep.mubr.f32.mxu0 0.0
      %381 = vmatmul.mubr.f32.gmra.mxu0 %v287
      %v382 = vpop.f32.mrf.mxu0
      %v383 = vadd.f32 %v309, %v382
      %v384 = vpop.f32.mrf.mxu0
      %385 = vdwg.mxu0
      %v386 = vld [vmem:[#allocation3] sm:$0xff]
      %v387 = vld [vmem:[#allocation3 + $0x8] sm:$0xff]
      %v388 = vadd.f32 %v386, %v378
      %v389 = vadd.f32 %v387, %v383
      %390 = vst [vmem:[#allocation12] sm:$0xff] %v388
      %391 = vst [vmem:[#allocation12 + $0x8] sm:$0xff] %v389
    $region53: #{tpu_custom_call.1} parent=1 // pred_fallthru
      _
    // Predicated region
    $region54: #{tpu_custom_call.1} parent=1 // pred_check
      _
    $region55: #{tpu_custom_call.1} parent=1 // pred_check_branch
      %393 = sbr.rel (0) target = $region57
    $region56: #{tpu_custom_call.1} parent=1 // pred_region
      %s395 = ssub.s32 256, 256
      %396 = vsyncadd [#allocation6], %s395
      %s397 = sshll.u32 [#allocation12], 4
      %s398 = int_to_ptr.vmem [resolvable:$true] %s397
      %403 = dma.vmem_to_hbm [thread:$0]  %s398, 256, %s6, [#allocation6], 128, 128, 8
    $region57: #{tpu_custom_call.1} parent=1 // pred_fallthru
      _
    // Predicated region
    $region58: #{tpu_custom_call.1} parent=1 // pred_check
      _
    $region59: #{tpu_custom_call.1} parent=1 // pred_check_branch
      %405 = sbr.rel (0) target = $region61
    $region60: #{tpu_custom_call.1} parent=1 // pred_region
      %406 = dma.done [#allocation6], 256
    $region61: #{tpu_custom_call.1} parent=1 // pred_fallthru
      _
    %407 = vsyncpa [#allocation5], 1
    %408 = vsyncpa [#allocation8], 1
    %409 = vsyncpa [#allocation11], 1
    %410 = vsyncpa [#allocation6], 1

</llo_original>
